<compile_context>
chip_gen: v6e
topology: v6e:2x2x1
jax: 0.10.0
libtpu: 0.0.40
codegen_flags: <defaults>
</compile_context>

<pallas_src>
import functools

import jax
import jax.numpy as jnp
from jax import lax
from jax.experimental import pallas as pl
from jax.experimental.pallas import tpu as pltpu


# y[m, n] = sum_k x[m, k] * w[n, k]   (weight kept in PyTorch (out, in) layout)
_CONTRACT_LAST = (((1,), (1,)), ((), ()))


def _proj_kernel(*refs, activation, use_mask):
    """activation(x @ W.T + bias) [* keep-mask] for one row-tile of x."""
    if use_mask:
        x_ref, w_ref, bias_ref, m_ref, o_ref = refs
    else:
        x_ref, w_ref, bias_ref, o_ref = refs
        m_ref = None

    y = lax.dot_general(x_ref[...], w_ref[...], _CONTRACT_LAST,
                        preferred_element_type=jnp.float32)
    y = y + bias_ref[...]
    if activation == "tanh":
        y = jnp.tanh(y)
    else:  # sigmoid (explicit form; guaranteed Mosaic lowering via exp)
        y = 1.0 / (1.0 + jnp.exp(-y))
    if m_ref is not None:
        y = y * m_ref[...]
    o_ref[...] = y.astype(o_ref.dtype)


def _gated_attn_kernel(*refs, use_mask):
    """Fused per-img-row-tile: a = tanh(img Wa^T + ba)[*mask], A = a b^T, out = (A b) Wo^T."""
    if use_mask:
        img_ref, wa_ref, ba_ref, ma_ref, b_ref, wo_ref, out_ref, attn_ref = refs
    else:
        img_ref, wa_ref, ba_ref, b_ref, wo_ref, out_ref, attn_ref = refs
        ma_ref = None

    a = lax.dot_general(img_ref[...], wa_ref[...], _CONTRACT_LAST,
                        preferred_element_type=jnp.float32)
    a = jnp.tanh(a + ba_ref[...])
    if ma_ref is not None:
        a = a * ma_ref[...]

    b = b_ref[...].astype(jnp.float32)                               # (N_t, H)
    attn = lax.dot_general(a, b, _CONTRACT_LAST,
                           preferred_element_type=jnp.float32)       # (tm, N_t)
    mid = jnp.dot(attn, b, preferred_element_type=jnp.float32)       # (tm, H)
    out = lax.dot_general(mid, wo_ref[...], _CONTRACT_LAST,
                          preferred_element_type=jnp.float32)        # (tm, out_dim)

    out_ref[...] = out.astype(out_ref.dtype)
    attn_ref[...] = attn.astype(attn_ref.dtype)


def gated_attention(img, tab, wa, ba, wb, bb, wo, *,
                    mask_a=None, mask_b=None, tile_m=256, tile_t=256):
    """Gated_Attention forward.

    img: (N_i, dim), tab: (N_t, dim) float32.
    wa, wb: (H, dim); ba, bb: (H,); wo: (out_dim, H)  -- PyTorch layouts (H=256).
    mask_a / mask_b: optional pre-scaled inverted-dropout keep masks
                     ((N_i, H) / (N_t, H)); None => eval mode (dropout = identity).
    Returns (out: (N_i, out_dim), A: (N_i, N_t)).
    """
    N_i, dim = img.shape
    N_t = tab.shape[0]
    H = wa.shape[0]
    out_dim = wo.shape[0]

    ba2 = ba.reshape(1, H)
    bb2 = bb.reshape(1, H)

    # Row-tile sizes: either the full (possibly small) row count, or a
    # 128-aligned tile with partial last block handled by Pallas masking.
    tm = N_i if N_i <= tile_m else tile_m
    tt = N_t if N_t <= tile_t else tile_t

    cparams = pltpu.CompilerParams(
        dimension_semantics=("parallel",),          # megacore-shardable on v7x
        vmem_limit_bytes=32 * 1024 * 1024)          # explicit budget (v7x-safe)

    # ---- Stage 1: b = sigmoid(tab @ Wb.T + bb) [* mask_b], tiled over tab rows. ----
    use_mb = mask_b is not None
    in_specs_b = [
        pl.BlockSpec((tt, dim), lambda i: (i, 0)),
        pl.BlockSpec((H, dim), lambda i: (0, 0)),     # Wb resident
        pl.BlockSpec((1, H), lambda i: (0, 0)),       # bias resident
    ]
    args_b = [tab, wb, bb2]
    if use_mb:
        in_specs_b.append(pl.BlockSpec((tt, H), lambda i: (i, 0)))
        args_b.append(mask_b)

    b = pl.pallas_call(
        functools.partial(_proj_kernel, activation="sigmoid", use_mask=use_mb),
        out_shape=jax.ShapeDtypeStruct((N_t, H), jnp.float32),
        grid_spec=pltpu.PrefetchScalarGridSpec(
            num_scalar_prefetch=0,
            grid=(pl.cdiv(N_t, tt),),
            in_specs=in_specs_b,
            out_specs=pl.BlockSpec((tt, H), lambda i: (i, 0)),
        ),
        compiler_params=cparams,
    )(*args_b)

    # ---- Stage 2: fused a-projection + gating matmuls + output projection. ----
    use_ma = mask_a is not None
    in_specs_a = [
        pl.BlockSpec((tm, dim), lambda i: (i, 0)),
        pl.BlockSpec((H, dim), lambda i: (0, 0)),     # Wa resident
        pl.BlockSpec((1, H), lambda i: (0, 0)),       # bias resident
    ]
    args_a = [img, wa, ba2]
    if use_ma:
        in_specs_a.append(pl.BlockSpec((tm, H), lambda i: (i, 0)))
        args_a.append(mask_a)
    in_specs_a += [
        pl.BlockSpec((N_t, H), lambda i: (0, 0)),        # full b, resident in VMEM
        pl.BlockSpec((out_dim, H), lambda i: (0, 0)),    # Wo resident
    ]
    args_a += [b, wo]

    out, attn = pl.pallas_call(
        functools.partial(_gated_attn_kernel, use_mask=use_ma),
        out_shape=(jax.ShapeDtypeStruct((N_i, out_dim), img.dtype),
                   jax.ShapeDtypeStruct((N_i, N_t), jnp.float32)),
        grid_spec=pltpu.PrefetchScalarGridSpec(
            num_scalar_prefetch=0,
            grid=(pl.cdiv(N_i, tm),),
            in_specs=in_specs_a,
            out_specs=[pl.BlockSpec((tm, out_dim), lambda i: (i, 0)),
                       pl.BlockSpec((tm, N_t), lambda i: (i, 0))],
        ),
        compiler_params=cparams,
    )(*args_a)
    return out, attn


if __name__ == "__main__":
    # Small shapes consistent with the module (module defaults: dim=1024, H=256, out=1024).
    N_i, N_t = 8, 8
    DIM, H, OUT = 128, 256, 128

    key = jax.random.PRNGKey(0)
    (k_img, k_tab, k_wa, k_ba, k_wb, k_bb, k_wo, k_ma, k_mb) = jax.random.split(key, 9)

    bnd1 = 1.0 / (DIM ** 0.5)
    bnd2 = 1.0 / (H ** 0.5)
    wa = jax.random.uniform(k_wa, (H, DIM), jnp.float32, -bnd1, bnd1)
    ba = jax.random.uniform(k_ba, (H,), jnp.float32, -bnd1, bnd1)
    wb = jax.random.uniform(k_wb, (H, DIM), jnp.float32, -bnd1, bnd1)
    bb = jax.random.uniform(k_bb, (H,), jnp.float32, -bnd1, bnd1)
    wo = jax.random.uniform(k_wo, (OUT, H), jnp.float32, -bnd2, bnd2)

    img = jax.random.normal(k_img, (N_i, DIM), jnp.float32)
    tab = jax.random.normal(k_tab, (N_t, DIM), jnp.float32)

    # ---- Eval-mode forward (dropout = identity), checked vs pure-JAX reference. ----
    out, attn = gated_attention(img, tab, wa, ba, wb, bb, wo)
    out, attn = jax.block_until_ready((out, attn))

    a_ref = jnp.tanh(img @ wa.T + ba)
    b_ref = jax.nn.sigmoid(tab @ wb.T + bb)
    A_ref = a_ref @ b_ref.T
    out_ref = (A_ref @ b_ref) @ wo.T

    assert out.shape == (N_i, OUT) and attn.shape == (N_i, N_t)
    assert jnp.allclose(attn, A_ref, atol=1e-3, rtol=1e-3)
    assert jnp.allclose(out, out_ref, atol=1e-3, rtol=1e-3)

    # ---- Training-mode forward: inverted-dropout keep masks applied in-kernel. ----
    p = 0.25
    keep = 1.0 - p
    mask_a = (jax.random.bernoulli(k_ma, keep, (N_i, H)) / keep).astype(jnp.float32)
    mask_b = (jax.random.bernoulli(k_mb, keep, (N_t, H)) / keep).astype(jnp.float32)
    out_t, attn_t = gated_attention(img, tab, wa, ba, wb, bb, wo,
                                    mask_a=mask_a, mask_b=mask_b)
    out_t, attn_t = jax.block_until_ready((out_t, attn_t))

    a_t = jnp.tanh(img @ wa.T + ba) * mask_a
    b_t = jax.nn.sigmoid(tab @ wb.T + bb) * mask_b
    A_t = a_t @ b_t.T
    out_t_ref = (A_t @ b_t) @ wo.T
    assert jnp.allclose(attn_t, A_t, atol=1e-3, rtol=1e-3)
    assert jnp.allclose(out_t, out_t_ref, atol=1e-3, rtol=1e-3)

    print("KERNEL_OK")
</pallas_src>

<mosaic_0001>
module attributes {stable_mosaic.version = 11 : i64} {
  func.func @_proj_kernel(%arg0: i32, %arg1: memref<8x128xf32, #tpu.memory_space<vmem>>, %arg2: memref<256x128xf32, #tpu.memory_space<vmem>>, %arg3: memref<1x256xf32, #tpu.memory_space<vmem>>, %arg4: memref<8x256xf32, #tpu.memory_space<vmem>>) attributes {dimension_semantics = [#tpu.dimension_semantics<parallel>], iteration_bounds = array<i64: 1>, scalar_prefetch = 0 : i64, scratch_operands = 0 : i64, tpu.core_type = #tpu.core_type<tc>, window_params = [{transform_indices = @transform_0, window_bounds = array<i64: 8, 128>}, {pipeline_mode = #tpu.pipeline_mode<synchronous>, transform_indices = @transform_1, window_bounds = array<i64: 256, 128>}, {pipeline_mode = #tpu.pipeline_mode<synchronous>, transform_indices = @transform_2, window_bounds = array<i64: 1, 256>}, {transform_indices = @transform_3, window_bounds = array<i64: 8, 256>}]} {
    %c0 = arith.constant 0 : index
    %c0_0 = arith.constant 0 : index
    %0 = vector.load %arg1[%c0, %c0_0] : memref<8x128xf32, #tpu.memory_space<vmem>>, vector<8x128xf32>
    %c0_1 = arith.constant 0 : index
    %c0_2 = arith.constant 0 : index
    %1 = vector.load %arg2[%c0_1, %c0_2] : memref<256x128xf32, #tpu.memory_space<vmem>>, vector<256x128xf32>
    %cst = arith.constant dense<0.000000e+00> : vector<8x256xf32>
    %2 = tpu.matmul %0, %1, %cst {dimension_numbers = #tpu.dot_dimension_numbers<[1], [1], [0], [0], [0, 0, 1, 0], [], []>} : vector<8x128xf32>, vector<256x128xf32>, vector<8x256xf32> -> vector<8x256xf32>
    %c0_3 = arith.constant 0 : index
    %c0_4 = arith.constant 0 : index
    %3 = vector.load %arg3[%c0_3, %c0_4] : memref<1x256xf32, #tpu.memory_space<vmem>>, vector<1x256xf32>
    %4 = vector.broadcast %3 : vector<1x256xf32> to vector<8x256xf32>
    %5 = arith.addf %2, %4 : vector<8x256xf32>
    %cst_5 = arith.constant 0.000000e+00 : f32
    %6 = vector.broadcast %cst_5 : f32 to vector<8x256xf32>
    %7 = arith.subf %6, %5 : vector<8x256xf32>
    %8 = math.exp %7 : vector<8x256xf32>
    %cst_6 = arith.constant 1.000000e+00 : f32
    %9 = vector.broadcast %cst_6 : f32 to vector<8x256xf32>
    %10 = arith.addf %9, %8 : vector<8x256xf32>
    %cst_7 = arith.constant 1.000000e+00 : f32
    %11 = vector.broadcast %cst_7 : f32 to vector<8x256xf32>
    %12 = arith.divf %11, %10 : vector<8x256xf32>
    %c0_8 = arith.constant 0 : index
    %c0_9 = arith.constant 0 : index
    %13 = vector.load %arg4[%c0_8, %c0_9] : memref<8x256xf32, #tpu.memory_space<vmem>>, vector<8x256xf32>
    tpu.vector_store %arg4[%c0_8, %c0_9], %12 {strides = array<i32>} : memref<8x256xf32, #tpu.memory_space<vmem>>, vector<8x256xf32>,
    return
  }
  func.func @transform_0(%arg0: i32) -> (i32, i32) {
    %c0_i32 = arith.constant 0 : i32
    %c0_i32_0 = arith.constant 0 : i32
    return %arg0, %c0_i32 : i32, i32
  }
  func.func @transform_1(%arg0: i32) -> (i32, i32) {
    %c0_i32 = arith.constant 0 : i32
    %c0_i32_0 = arith.constant 0 : i32
    %c0_i32_1 = arith.constant 0 : i32
    return %c0_i32, %c0_i32_0 : i32, i32
  }
  func.func @transform_2(%arg0: i32) -> (i32, i32) {
    %c0_i32 = arith.constant 0 : i32
    %c0_i32_0 = arith.constant 0 : i32
    %c0_i32_1 = arith.constant 0 : i32
    return %c0_i32, %c0_i32_0 : i32, i32
  }
  func.func @transform_3(%arg0: i32) -> (i32, i32) {
    %c0_i32 = arith.constant 0 : i32
    %c0_i32_0 = arith.constant 0 : i32
    return %arg0, %c0_i32 : i32, i32
  }
}

</mosaic_0001>

<llo_original>
// kernel: tpu_custom_call.1
$region0: #{tpu_custom_call.1}
  #allocation0 [shape = 'u32[]', space=smem, size = 0x4, offset = 0x4, fixed_abs, tag = 'smem constant byte address 0x4 - core index']
  #allocation1 [shape = 'u32[144,128]{1,0:T(1,128)}', space=vmem, size = 0x12000, scoped, tag = 'internal scratch']
  %s0 = inlined_call_operand.hbm [shape: f32[8,128], index: 0, kind: input, shape index: {}]
  %s1 = inlined_call_operand.hbm [shape: f32[256,128], index: 1, kind: input, shape index: {}]
  %s2 = inlined_call_operand.vmem [shape: f32[1,256], index: 2, kind: input, shape index: {}]
  %s3 = inlined_call_operand.hbm [shape: f32[8,256], index: 3, kind: output, shape index: {}]
  %s4 = sld [smem:[#allocation0]]
  $region30: #{tpu_custom_call.1} parent=0
    _
  %s6 = ssub.s32 1, %s4
  %s7 = scalar_select 0, %s6, %s4
  $region1: #{tpu_custom_call.1} parent=0
    #allocation2 [shape = 'u8[4096]{0}', space=vmem, size = 0x1000, scoped, tag = 'input window, operand 0, single buffered']
    #allocation3 [shape = 's32[1]{0}', space=sflag, size = 0x4, scoped, tag = 'scoped memory for tpu_custom_call.1']
    #allocation4 [shape = 's32[1]{0}', space=sflag, size = 0x4, scoped, tag = 'scoped memory for tpu_custom_call.1']
    #allocation5 [shape = 'u8[131072]{0}', space=vmem, size = 0x20000, scoped, tag = 'input window, operand 1, single buffered']
    #allocation6 [shape = 's32[1]{0}', space=sflag, size = 0x4, scoped, tag = 'scoped memory for tpu_custom_call.1']
    #allocation7 [shape = 'u8[8192]{0}', space=vmem, size = 0x2000, scoped, tag = 'output window, operand 0, single buffered']
    %8 = vsyncpa [#allocation3], 0
    %9 = vsyncpa [#allocation6], 0
    %10 = vsyncpa [#allocation4], 0
    // Predicated region
    $region2: #{tpu_custom_call.1} parent=1 // pred_check
      _
    $region3: #{tpu_custom_call.1} parent=1 // pred_check_branch
      %12 = sbr.rel (0) target = $region5
    $region4: #{tpu_custom_call.1} parent=1 // pred_region
      %s14 = ssub.s32 128, 128
      %15 = vsyncadd [#allocation3], %s14
      %s17 = sshll.u32 [#allocation2], 4
      %s18 = int_to_ptr.vmem [resolvable:$true] %s17
      %20 = dma.hbm_to_vmem [thread:$0]  %s0, 128, %s18, [#allocation3]
    $region5: #{tpu_custom_call.1} parent=1 // pred_fallthru
      _
    // Predicated region
    $region6: #{tpu_custom_call.1} parent=1 // pred_check
      _
    $region7: #{tpu_custom_call.1} parent=1 // pred_check_branch
      %22 = sbr.rel (0) target = $region9
    $region8: #{tpu_custom_call.1} parent=1 // pred_region
      %s24 = ssub.s32 4096, 4096
      %25 = vsyncadd [#allocation6], %s24
      %s26 = sshll.u32 [#allocation5], 4
      %s27 = int_to_ptr.vmem [resolvable:$true] %s26
      %32 = dma.hbm_to_vmem [thread:$0]  %s1, 4096, %s27, [#allocation6], 128, 128, 8
    $region9: #{tpu_custom_call.1} parent=1 // pred_fallthru
      _
    // Predicated region
    $region10: #{tpu_custom_call.1} parent=1 // pred_check
      _
    $region11: #{tpu_custom_call.1} parent=1 // pred_check_branch
      %34 = sbr.rel (0) target = $region13
    $region12: #{tpu_custom_call.1} parent=1 // pred_region
      _
    $region13: #{tpu_custom_call.1} parent=1 // pred_fallthru
      _
    // Predicated region
    $region14: #{tpu_custom_call.1} parent=1 // pred_check
      _
    $region15: #{tpu_custom_call.1} parent=1 // pred_check_branch
      %36 = sbr.rel (0) target = $region17
    $region16: #{tpu_custom_call.1} parent=1 // pred_region
      %37 = dma.done [#allocation3], 128
    $region17: #{tpu_custom_call.1} parent=1 // pred_fallthru
      _
    // Predicated region
    $region18: #{tpu_custom_call.1} parent=1 // pred_check
      _
    $region19: #{tpu_custom_call.1} parent=1 // pred_check_branch
      %39 = sbr.rel (0) target = $region21
    $region20: #{tpu_custom_call.1} parent=1 // pred_region
      %40 = dma.done [#allocation6], 4096
    $region21: #{tpu_custom_call.1} parent=1 // pred_fallthru
      _
    %v41 = vld [vmem:[#allocation2] sm:$0xff]
    %v42 = vld [vmem:[#allocation5] sm:$0xff]
    %v43 = vld [vmem:[#allocation5 + $0x8] sm:$0xff]
    %v44 = vld [vmem:[#allocation5 + $0x10] sm:$0xff]
    %v45 = vld [vmem:[#allocation5 + $0x18] sm:$0xff]
    %v46 = vld [vmem:[#allocation5 + $0x20] sm:$0xff]
    %v47 = vld [vmem:[#allocation5 + $0x28] sm:$0xff]
    %v48 = vld [vmem:[#allocation5 + $0x30] sm:$0xff]
    %v49 = vld [vmem:[#allocation5 + $0x38] sm:$0xff]
    %v50 = vld [vmem:[#allocation5 + $0x40] sm:$0xff]
    %v51 = vld [vmem:[#allocation5 + $0x48] sm:$0xff]
    %v52 = vld [vmem:[#allocation5 + $0x50] sm:$0xff]
    %v53 = vld [vmem:[#allocation5 + $0x58] sm:$0xff]
    %v54 = vld [vmem:[#allocation5 + $0x60] sm:$0xff]
    %v55 = vld [vmem:[#allocation5 + $0x68] sm:$0xff]
    %v56 = vld [vmem:[#allocation5 + $0x70] sm:$0xff]
    %v57 = vld [vmem:[#allocation5 + $0x78] sm:$0xff]
    %v58 = vld [vmem:[#allocation5 + $0x80] sm:$0xff]
    %v59 = vld [vmem:[#allocation5 + $0x88] sm:$0xff]
    %v60 = vld [vmem:[#allocation5 + $0x90] sm:$0xff]
    %v61 = vld [vmem:[#allocation5 + $0x98] sm:$0xff]
    %v62 = vld [vmem:[#allocation5 + $0xa0] sm:$0xff]
    %v63 = vld [vmem:[#allocation5 + $0xa8] sm:$0xff]
    %v64 = vld [vmem:[#allocation5 + $0xb0] sm:$0xff]
    %v65 = vld [vmem:[#allocation5 + $0xb8] sm:$0xff]
    %v66 = vld [vmem:[#allocation5 + $0xc0] sm:$0xff]
    %v67 = vld [vmem:[#allocation5 + $0xc8] sm:$0xff]
    %v68 = vld [vmem:[#allocation5 + $0xd0] sm:$0xff]
    %v69 = vld [vmem:[#allocation5 + $0xd8] sm:$0xff]
    %v70 = vld [vmem:[#allocation5 + $0xe0] sm:$0xff]
    %v71 = vld [vmem:[#allocation5 + $0xe8] sm:$0xff]
    %v72 = vld [vmem:[#allocation5 + $0xf0] sm:$0xff]
    %v73 = vld [vmem:[#allocation5 + $0xf8] sm:$0xff]
    %v74 = vld [vmem:[%s2] sm:$0x3]
    %v76 = vlaneseq
    %v77 = vshrl.u32 %v76, 7
    %v78 = vsub.s32 0, %v77
    %v79 = vrot.slane %v74, %v78
    %v80 = vlaneseq
    %v81 = vshrl.u32 %v80, 7
    %v82 = vsub.s32 1, %v81
    %v83 = vrot.slane %v74, %v82
    %86 = vmatprep.subr.mxu0 0.0
    %87 = vmatpush1.xpose.msra.mxu0 %v57
    %88 = vmatprep.subr.mxu0 0.0
    %89 = vmatpush1.xpose.msra.mxu0 %v56
    %90 = vmatprep.subr.mxu0 0.0
    %91 = vmatpush1.xpose.msra.mxu0 %v55
    %92 = vmatprep.subr.mxu0 0.0
    %93 = vmatpush1.xpose.msra.mxu0 %v54
    %94 = vmatprep.subr.mxu0 0.0
    %95 = vmatpush1.xpose.msra.mxu0 %v53
    %96 = vmatprep.subr.mxu0 0.0
    %97 = vmatpush1.xpose.msra.mxu0 %v52
    %98 = vmatprep.subr.mxu0 0.0
    %99 = vmatpush1.xpose.msra.mxu0 %v51
    %100 = vmatprep.subr.mxu0 0.0
    %101 = vmatpush1.xpose.msra.mxu0 %v50
    %102 = vmatprep.subr.mxu0 0.0
    %103 = vmatpush1.xpose.msra.mxu0 %v49
    %104 = vmatprep.subr.mxu0 0.0
    %105 = vmatpush1.xpose.msra.mxu0 %v48
    %106 = vmatprep.subr.mxu0 0.0
    %107 = vmatpush1.xpose.msra.mxu0 %v47
    %108 = vmatprep.subr.mxu0 0.0
    %109 = vmatpush1.xpose.msra.mxu0 %v46
    %110 = vmatprep.subr.mxu0 0.0
    %111 = vmatpush1.xpose.msra.mxu0 %v45
    %112 = vmatprep.subr.mxu0 0.0
    %113 = vmatpush1.xpose.msra.mxu0 %v44
    %114 = vmatprep.subr.mxu0 0.0
    %115 = vmatpush1.xpose.msra.mxu0 %v43
    %116 = vmatprep.subr.mxu0 0.0
    %117 = vmatpush1.xpose.msra.mxu0 %v42
    %118 = vmatprep.subr.mxu0 0.0
    %119 = vmatpush2.xpose.msra.mxu0 %v73
    %120 = vmatprep.subr.mxu0 0.0
    %121 = vmatpush2.xpose.msra.mxu0 %v72
    %122 = vmatprep.subr.mxu0 0.0
    %123 = vmatpush2.xpose.msra.mxu0 %v71
    %124 = vmatprep.subr.mxu0 0.0
    %125 = vmatpush2.xpose.msra.mxu0 %v70
    %126 = vmatprep.subr.mxu0 0.0
    %127 = vmatpush2.xpose.msra.mxu0 %v69
    %128 = vmatprep.subr.mxu0 0.0
    %129 = vmatpush2.xpose.msra.mxu0 %v68
    %130 = vmatprep.subr.mxu0 0.0
    %131 = vmatpush2.xpose.msra.mxu0 %v67
    %132 = vmatprep.subr.mxu0 0.0
    %133 = vmatpush2.xpose.msra.mxu0 %v66
    %134 = vmatprep.subr.mxu0 0.0
    %135 = vmatpush2.xpose.msra.mxu0 %v65
    %136 = vmatprep.subr.mxu0 0.0
    %137 = vmatpush2.xpose.msra.mxu0 %v64
    %138 = vmatprep.subr.mxu0 0.0
    %139 = vmatpush2.xpose.msra.mxu0 %v63
    %140 = vmatprep.subr.mxu0 0.0
    %141 = vmatpush2.xpose.msra.mxu0 %v62
    %142 = vmatprep.subr.mxu0 0.0
    %143 = vmatpush2.xpose.msra.mxu0 %v61
    %144 = vmatprep.subr.mxu0 0.0
    %145 = vmatpush2.xpose.msra.mxu0 %v60
    %146 = vmatprep.subr.mxu0 0.0
    %147 = vmatpush2.xpose.msra.mxu0 %v59
    %148 = vmatprep.subr.mxu0 0.0
    %149 = vmatpush2.xpose.msra.mxu0 %v58
    %150 = vmatprep.mubr.f32.mxu0 0.0
    %151 = vmatmul.mubr.f32.gmra.mxu0 %v41
    %v152 = vpop.f32.mrf.mxu0
    %v153 = vadd.f32 %v79, %v152
    %v154 = vpop.f32.mrf.mxu0
    %v155 = vadd.f32 %v83, %v154
    %156 = vdwg.mxu0
    %v157 = vsub.f32 0.0, %v153
    %v158 = vsub.f32 0.0, %v155
    %v159 = vmul.f32 %v157, 1.442695
    %v160 = vpow.pop %v159
    %v161 = vmul.f32 %v158, 1.442695
    %v162 = vpow.pop %v161
    %v163 = vadd.f32 %v160, 1.0
    %v164 = vadd.f32 %v162, 1.0
    %v165 = vrcp.pop %v163
    %v166 = vmul.f32 1.0, %v165
    %v167 = vrcp.pop %v164
    %v168 = vmul.f32 1.0, %v167
    %169 = vst [vmem:[#allocation7] sm:$0xff] %v166
    %170 = vst [vmem:[#allocation7 + $0x8] sm:$0xff] %v168
    // Predicated region
    $region22: #{tpu_custom_call.1} parent=1 // pred_check
      _
    $region23: #{tpu_custom_call.1} parent=1 // pred_check_branch
      %172 = sbr.rel (0) target = $region25
    $region24: #{tpu_custom_call.1} parent=1 // pred_region
      %s174 = ssub.s32 256, 256
      %175 = vsyncadd [#allocation4], %s174
      %s177 = sshll.u32 [#allocation7], 4
      %s178 = int_to_ptr.vmem [resolvable:$true] %s177
      %180 = dma.vmem_to_hbm [thread:$0]  %s178, 256, %s3, [#allocation4]
    $region25: #{tpu_custom_call.1} parent=1 // pred_fallthru
      _
    // Predicated region
    $region26: #{tpu_custom_call.1} parent=1 // pred_check
      _
    $region27: #{tpu_custom_call.1} parent=1 // pred_check_branch
      %182 = sbr.rel (0) target = $region29
    $region28: #{tpu_custom_call.1} parent=1 // pred_region
      %183 = dma.done [#allocation4], 256
    $region29: #{tpu_custom_call.1} parent=1 // pred_fallthru
      _
    %184 = vsyncpa [#allocation3], 1
    %185 = vsyncpa [#allocation6], 1
    %186 = vsyncpa [#allocation4], 1

</llo_original>
